<compile_context>
chip_gen: v6e
topology: v6e:2x2x1
jax: 0.10.0
libtpu: 0.0.40
codegen_flags: <defaults>
</compile_context>

<pallas_src>
import jax
import jax.numpy as jnp
from jax import lax
from jax.experimental import pallas as pl
from jax.experimental.pallas import tpu as pltpu


def _round_up(n: int, m: int) -> int:
    return ((n + m - 1) // m) * m


def _pad_feature_dim(d: int) -> int:
    # 128-lane alignment; once past one MXU tile, align to 256 (v6e/v7x MXU width).
    return 128 if d <= 128 else _round_up(d, 256)


# --------------------------------------------------------------------------- #
# Kernel
# --------------------------------------------------------------------------- #
def _make_fused_mlp_kernel(has_hidden: bool):
    """Fused MLP on one batch tile; activation never leaves VMEM/vregs."""

    def kernel(*refs):
        if has_hidden:
            (x_ref, w_in_ref, b_in_ref, w_hid_ref, b_hid_ref,
             w_out_ref, b_out_ref, o_ref) = refs
        else:
            (x_ref, w_in_ref, b_in_ref, w_out_ref, b_out_ref, o_ref) = refs

        # Layer 0: input -> hidden, ReLU.  bf16 MXU operands, f32 accumulate/epilogue.
        h = jnp.dot(x_ref[...].astype(jnp.bfloat16), w_in_ref[...],
                    preferred_element_type=jnp.float32) + b_in_ref[...]
        h = jnp.maximum(h, 0.0)

        if has_hidden:
            n_hidden = w_hid_ref.shape[0]

            def body(l, h):
                h = jnp.dot(h.astype(jnp.bfloat16), w_hid_ref[l],
                            preferred_element_type=jnp.float32) + b_hid_ref[l]
                return jnp.maximum(h, 0.0)

            h = lax.fori_loop(0, n_hidden, body, h, unroll=(n_hidden <= 4))

        # Final layer: hidden -> output, no ReLU.
        h = jnp.dot(h.astype(jnp.bfloat16), w_out_ref[...],
                    preferred_element_type=jnp.float32) + b_out_ref[...]
        o_ref[...] = h.astype(o_ref.dtype)

    return kernel


# --------------------------------------------------------------------------- #
# One-time parameter preparation (hoisted out of the forward path)
# --------------------------------------------------------------------------- #
def prepare_client_network_params(params):
    """params: list of (w_t, b) with w_t (in, out) and b (1, out), all f32.

    Pads feature dims (zero pad), casts weights to bf16 (biases stay f32), and
    stacks the identical hidden layers into (L, H, H) / (L, 1, H).
    """
    assert len(params) >= 2, "client_network always has at least 2 Linear layers"

    def pad_layer(w_t, b):
        fi, fo = w_t.shape
        fi_p, fo_p = _pad_feature_dim(fi), _pad_feature_dim(fo)
        w_p = jnp.zeros((fi_p, fo_p), jnp.float32).at[:fi, :fo].set(w_t)
        b_p = jnp.zeros((1, fo_p), jnp.float32).at[:, :fo].set(b)
        return w_p.astype(jnp.bfloat16), b_p

    w_in, b_in = pad_layer(*params[0])
    w_out, b_out = pad_layer(*params[-1])

    hidden = params[1:-1]
    if hidden:
        w_hid = jnp.stack([pad_layer(w, b)[0] for (w, b) in hidden], axis=0)
        b_hid = jnp.stack([pad_layer(w, b)[1] for (w, b) in hidden], axis=0)
    else:
        w_hid, b_hid = None, None

    return {
        "w_in": w_in, "b_in": b_in,
        "w_hid": w_hid, "b_hid": b_hid,
        "w_out": w_out, "b_out": b_out,
        "input_dim": params[0][0].shape[0],
        "output_dim": params[-1][0].shape[1],
    }


# --------------------------------------------------------------------------- #
# Forward wrapper
# --------------------------------------------------------------------------- #
def client_network_forward(prepared, x, *, block_b: int = 512):
    """x: (B, input_dim) f32 -> (B, output_dim) f32."""
    B, in_dim = x.shape
    assert in_dim == prepared["input_dim"]

    w_in, b_in = prepared["w_in"], prepared["b_in"]
    w_hid, b_hid = prepared["w_hid"], prepared["b_hid"]
    w_out, b_out = prepared["w_out"], prepared["b_out"]
    has_hidden = w_hid is not None

    in_p = w_in.shape[0]
    out_p = w_out.shape[1]

    # ---- batch tiling: bf16-friendly (multiple of 16), >=2 grid steps when
    # possible (v7x has 2 TensorCores), and re-balanced so padding waste is small.
    B_aligned = _round_up(B, 16)
    tb = min(block_b, B_aligned)
    grid_b = pl.cdiv(B_aligned, tb)
    if grid_b < 2 and B_aligned >= 32:
        grid_b = 2
    tb = _round_up(pl.cdiv(B_aligned, grid_b), 16)
    grid_b = pl.cdiv(B_aligned, tb)
    B_p = grid_b * tb

    x_p = jnp.zeros((B_p, in_p), jnp.float32).at[:B, :in_dim].set(x)

    # ---- specs: batch tile streams; weights/biases resident (constant index_map).
    in_specs = [pl.BlockSpec((tb, in_p), lambda i: (i, 0)),
                pl.BlockSpec(w_in.shape, lambda i: (0, 0)),
                pl.BlockSpec(b_in.shape, lambda i: (0, 0))]
    operands = [w_in, b_in]
    if has_hidden:
        in_specs += [pl.BlockSpec(w_hid.shape, lambda i: (0, 0, 0)),
                     pl.BlockSpec(b_hid.shape, lambda i: (0, 0, 0))]
        operands += [w_hid, b_hid]
    in_specs += [pl.BlockSpec(w_out.shape, lambda i: (0, 0)),
                 pl.BlockSpec(b_out.shape, lambda i: (0, 0))]
    operands += [w_out, b_out]

    out_specs = pl.BlockSpec((tb, out_p), lambda i: (i, 0))

    # ---- cost + VMEM budgeting
    w_bytes = (w_in.size + w_out.size) * 2 + (b_in.size + b_out.size) * 4
    flop_terms = w_in.size + w_out.size
    if has_hidden:
        w_bytes += w_hid.size * 2 + b_hid.size * 4
        flop_terms += w_hid.size
    act_tile_bytes = (tb * in_p + tb * out_p) * 4
    # Weights are grid-invariant but the pipeline still allocates 2 buffers each;
    # budget 2x weights + double-buffered activation tiles + headroom.
    vmem_limit = int(min(max(2 * w_bytes + 4 * act_tile_bytes + (16 << 20),
                             32 << 20), 64 << 20))

    flops = 2 * B_p * flop_terms
    bytes_accessed = x_p.size * 4 + w_bytes + B_p * out_p * 4

    y_p = pl.pallas_call(
        _make_fused_mlp_kernel(has_hidden),
        out_shape=jax.ShapeDtypeStruct((B_p, out_p), jnp.float32),
        grid_spec=pl.GridSpec(grid=(grid_b,), in_specs=in_specs,
                              out_specs=out_specs),
        compiler_params=pltpu.CompilerParams(
            dimension_semantics=("parallel",),
            vmem_limit_bytes=vmem_limit,
        ),
        cost_estimate=pl.CostEstimate(
            flops=flops, transcendentals=0, bytes_accessed=bytes_accessed),
    )(x_p, *operands)

    return y_p[:B, :prepared["output_dim"]]


# --------------------------------------------------------------------------- #
# Init matching nn.Linear defaults (weights returned already transposed)
# --------------------------------------------------------------------------- #
def init_client_network_params(key, n_layers, input_dim, hidden_dim, output_dim):
    dims = [(input_dim, hidden_dim)]
    dims += [(hidden_dim, hidden_dim)] * n_layers
    dims += [(hidden_dim, output_dim)]

    params = []
    for (fan_in, fan_out) in dims:
        key, kw, kb = jax.random.split(key, 3)
        bound = 1.0 / jnp.sqrt(fan_in)   # nn.Linear default U(-1/sqrt(in), 1/sqrt(in))
        w_t = jax.random.uniform(kw, (fan_in, fan_out), jnp.float32, -bound, bound)
        b = jax.random.uniform(kb, (1, fan_out), jnp.float32, -bound, bound)
        params.append((w_t, b))
    return params


if __name__ == "__main__":
    # Small shapes consistent with the module's constructor.
    batch = 8
    n_layers = 2
    input_dim = 32
    hidden_dim = 32
    output_dim = 16

    key = jax.random.PRNGKey(0)
    key, kx = jax.random.split(key)
    x = jax.random.normal(kx, (batch, input_dim), jnp.float32)

    params = init_client_network_params(
        key, n_layers, input_dim, hidden_dim, output_dim
    )
    prepared = prepare_client_network_params(params)   # one-time pad/cast/stack

    out = client_network_forward(prepared, x)
    out = jax.block_until_ready(out)

    # Sanity check against plain-JAX f32 reference (kernel uses bf16 MXU operands,
    # f32 accumulation -> relaxed tolerance).
    h_ref = x
    for i, (w_t, b) in enumerate(params):
        h_ref = h_ref @ w_t + b
        if i < len(params) - 1:
            h_ref = jnp.maximum(h_ref, 0.0)
    assert out.shape == (batch, output_dim)
    assert jnp.allclose(out, h_ref, atol=5e-2, rtol=5e-2), "mismatch vs reference"

    print("KERNEL_OK")
</pallas_src>

<mosaic_0001>
module attributes {stable_mosaic.version = 11 : i64} {
  func.func @kernel(%arg0: i32, %arg1: memref<16x128xf32, #tpu.memory_space<vmem>>, %arg2: memref<128x128xbf16, #tpu.memory_space<vmem>>, %arg3: memref<1x128xf32, #tpu.memory_space<vmem>>, %arg4: memref<2x128x128xbf16, #tpu.memory_space<vmem>>, %arg5: memref<2x1x128xf32, #tpu.memory_space<vmem>>, %arg6: memref<128x128xbf16, #tpu.memory_space<vmem>>, %arg7: memref<1x128xf32, #tpu.memory_space<vmem>>, %arg8: memref<16x128xf32, #tpu.memory_space<vmem>>) attributes {dimension_semantics = [#tpu.dimension_semantics<parallel>], iteration_bounds = array<i64: 1>, scalar_prefetch = 0 : i64, scratch_operands = 0 : i64, tpu.core_type = #tpu.core_type<tc>, window_params = [{transform_indices = @transform_0, window_bounds = array<i64: 16, 128>}, {pipeline_mode = #tpu.pipeline_mode<synchronous>, transform_indices = @transform_1, window_bounds = array<i64: 128, 128>}, {pipeline_mode = #tpu.pipeline_mode<synchronous>, transform_indices = @transform_2, window_bounds = array<i64: 1, 128>}, {pipeline_mode = #tpu.pipeline_mode<synchronous>, transform_indices = @transform_3, window_bounds = array<i64: 2, 128, 128>}, {pipeline_mode = #tpu.pipeline_mode<synchronous>, transform_indices = @transform_4, window_bounds = array<i64: 2, 1, 128>}, {pipeline_mode = #tpu.pipeline_mode<synchronous>, transform_indices = @transform_5, window_bounds = array<i64: 128, 128>}, {pipeline_mode = #tpu.pipeline_mode<synchronous>, transform_indices = @transform_6, window_bounds = array<i64: 1, 128>}, {transform_indices = @transform_7, window_bounds = array<i64: 16, 128>}]} {
    %c0 = arith.constant 0 : index
    %c0_0 = arith.constant 0 : index
    %0 = vector.load %arg1[%c0, %c0_0] : memref<16x128xf32, #tpu.memory_space<vmem>>, vector<16x128xf32>
    %1 = arith.truncf %0 : vector<16x128xf32> to vector<16x128xbf16>
    %c0_1 = arith.constant 0 : index
    %c0_2 = arith.constant 0 : index
    %2 = vector.load %arg2[%c0_1, %c0_2] : memref<128x128xbf16, #tpu.memory_space<vmem>>, vector<128x128xbf16>
    %cst = arith.constant dense<0.000000e+00> : vector<16x128xf32>
    %3 = tpu.matmul %1, %2, %cst {dimension_numbers = #tpu.dot_dimension_numbers<[1], [0], [0], [1], [0, 0, 1, 1], [], []>} : vector<16x128xbf16>, vector<128x128xbf16>, vector<16x128xf32> -> vector<16x128xf32>
    %c0_3 = arith.constant 0 : index
    %c0_4 = arith.constant 0 : index
    %4 = vector.load %arg3[%c0_3, %c0_4] : memref<1x128xf32, #tpu.memory_space<vmem>>, vector<1x128xf32>
    %5 = vector.broadcast %4 : vector<1x128xf32> to vector<16x128xf32>
    %6 = arith.addf %3, %5 : vector<16x128xf32>
    %cst_5 = arith.constant 0.000000e+00 : f32
    %7 = vector.broadcast %cst_5 : f32 to vector<16x128xf32>
    %8 = arith.maximumf %6, %7 : vector<16x128xf32>
    %c0_i32 = arith.constant 0 : i32
    %9 = arith.truncf %8 : vector<16x128xf32> to vector<16x128xbf16>
    %10 = arith.index_cast %c0_i32 : i32 to index
    %c0_6 = arith.constant 0 : index
    %c0_7 = arith.constant 0 : index
    %11 = vector.load %arg4[%10, %c0_6, %c0_7] : memref<2x128x128xbf16, #tpu.memory_space<vmem>>, vector<1x128x128xbf16>
    %12 = vector.shape_cast %11 : vector<1x128x128xbf16> to vector<128x128xbf16>
    %cst_8 = arith.constant dense<0.000000e+00> : vector<16x128xf32>
    %13 = tpu.matmul %9, %12, %cst_8 {dimension_numbers = #tpu.dot_dimension_numbers<[1], [0], [0], [1], [0, 0, 1, 1], [], []>} : vector<16x128xbf16>, vector<128x128xbf16>, vector<16x128xf32> -> vector<16x128xf32>
    %14 = arith.index_cast %c0_i32 : i32 to index
    %c0_9 = arith.constant 0 : index
    %c0_10 = arith.constant 0 : index
    %15 = vector.load %arg5[%14, %c0_9, %c0_10] : memref<2x1x128xf32, #tpu.memory_space<vmem>>, vector<1x1x128xf32>
    %16 = vector.shape_cast %15 : vector<1x1x128xf32> to vector<1x128xf32>
    %17 = vector.broadcast %16 : vector<1x128xf32> to vector<16x128xf32>
    %18 = arith.addf %13, %17 : vector<16x128xf32>
    %cst_11 = arith.constant 0.000000e+00 : f32
    %19 = vector.broadcast %cst_11 : f32 to vector<16x128xf32>
    %20 = arith.maximumf %18, %19 : vector<16x128xf32>
    %c1_i32 = arith.constant 1 : i32
    %21 = arith.truncf %20 : vector<16x128xf32> to vector<16x128xbf16>
    %22 = arith.index_cast %c1_i32 : i32 to index
    %c0_12 = arith.constant 0 : index
    %c0_13 = arith.constant 0 : index
    %23 = vector.load %arg4[%22, %c0_12, %c0_13] : memref<2x128x128xbf16, #tpu.memory_space<vmem>>, vector<1x128x128xbf16>
    %24 = vector.shape_cast %23 : vector<1x128x128xbf16> to vector<128x128xbf16>
    %cst_14 = arith.constant dense<0.000000e+00> : vector<16x128xf32>
    %25 = tpu.matmul %21, %24, %cst_14 {dimension_numbers = #tpu.dot_dimension_numbers<[1], [0], [0], [1], [0, 0, 1, 1], [], []>} : vector<16x128xbf16>, vector<128x128xbf16>, vector<16x128xf32> -> vector<16x128xf32>
    %26 = arith.index_cast %c1_i32 : i32 to index
    %c0_15 = arith.constant 0 : index
    %c0_16 = arith.constant 0 : index
    %27 = vector.load %arg5[%26, %c0_15, %c0_16] : memref<2x1x128xf32, #tpu.memory_space<vmem>>, vector<1x1x128xf32>
    %28 = vector.shape_cast %27 : vector<1x1x128xf32> to vector<1x128xf32>
    %29 = vector.broadcast %28 : vector<1x128xf32> to vector<16x128xf32>
    %30 = arith.addf %25, %29 : vector<16x128xf32>
    %cst_17 = arith.constant 0.000000e+00 : f32
    %31 = vector.broadcast %cst_17 : f32 to vector<16x128xf32>
    %32 = arith.maximumf %30, %31 : vector<16x128xf32>
    %c2_i32 = arith.constant 2 : i32
    %33 = arith.truncf %32 : vector<16x128xf32> to vector<16x128xbf16>
    %c0_18 = arith.constant 0 : index
    %c0_19 = arith.constant 0 : index
    %34 = vector.load %arg6[%c0_18, %c0_19] : memref<128x128xbf16, #tpu.memory_space<vmem>>, vector<128x128xbf16>
    %cst_20 = arith.constant dense<0.000000e+00> : vector<16x128xf32>
    %35 = tpu.matmul %33, %34, %cst_20 {dimension_numbers = #tpu.dot_dimension_numbers<[1], [0], [0], [1], [0, 0, 1, 1], [], []>} : vector<16x128xbf16>, vector<128x128xbf16>, vector<16x128xf32> -> vector<16x128xf32>
    %c0_21 = arith.constant 0 : index
    %c0_22 = arith.constant 0 : index
    %36 = vector.load %arg7[%c0_21, %c0_22] : memref<1x128xf32, #tpu.memory_space<vmem>>, vector<1x128xf32>
    %37 = vector.broadcast %36 : vector<1x128xf32> to vector<16x128xf32>
    %38 = arith.addf %35, %37 : vector<16x128xf32>
    %c0_23 = arith.constant 0 : index
    %c0_24 = arith.constant 0 : index
    %39 = vector.load %arg8[%c0_23, %c0_24] : memref<16x128xf32, #tpu.memory_space<vmem>>, vector<16x128xf32>
    tpu.vector_store %arg8[%c0_23, %c0_24], %38 {strides = array<i32>} : memref<16x128xf32, #tpu.memory_space<vmem>>, vector<16x128xf32>,
    return
  }
  func.func @transform_0(%arg0: i32) -> (i32, i32) {
    %c0_i32 = arith.constant 0 : i32
    %c0_i32_0 = arith.constant 0 : i32
    return %arg0, %c0_i32 : i32, i32
  }
  func.func @transform_1(%arg0: i32) -> (i32, i32) {
    %c0_i32 = arith.constant 0 : i32
    %c0_i32_0 = arith.constant 0 : i32
    %c0_i32_1 = arith.constant 0 : i32
    return %c0_i32, %c0_i32_0 : i32, i32
  }
  func.func @transform_2(%arg0: i32) -> (i32, i32) {
    %c0_i32 = arith.constant 0 : i32
    %c0_i32_0 = arith.constant 0 : i32
    %c0_i32_1 = arith.constant 0 : i32
    return %c0_i32, %c0_i32_0 : i32, i32
  }
  func.func @transform_3(%arg0: i32) -> (i32, i32, i32) {
    %c0_i32 = arith.constant 0 : i32
    %c0_i32_0 = arith.constant 0 : i32
    %c0_i32_1 = arith.constant 0 : i32
    %c0_i32_2 = arith.constant 0 : i32
    return %c0_i32, %c0_i32_0, %c0_i32_1 : i32, i32, i32
  }
  func.func @transform_4(%arg0: i32) -> (i32, i32, i32) {
    %c0_i32 = arith.constant 0 : i32
    %c0_i32_0 = arith.constant 0 : i32
    %c0_i32_1 = arith.constant 0 : i32
    %c0_i32_2 = arith.constant 0 : i32
    return %c0_i32, %c0_i32_0, %c0_i32_1 : i32, i32, i32
  }
  func.func @transform_5(%arg0: i32) -> (i32, i32) {
    %c0_i32 = arith.constant 0 : i32
    %c0_i32_0 = arith.constant 0 : i32
    %c0_i32_1 = arith.constant 0 : i32
    return %c0_i32, %c0_i32_0 : i32, i32
  }
  func.func @transform_6(%arg0: i32) -> (i32, i32) {
    %c0_i32 = arith.constant 0 : i32
    %c0_i32_0 = arith.constant 0 : i32
    %c0_i32_1 = arith.constant 0 : i32
    return %c0_i32, %c0_i32_0 : i32, i32
  }
  func.func @transform_7(%arg0: i32) -> (i32, i32) {
    %c0_i32 = arith.constant 0 : i32
    %c0_i32_0 = arith.constant 0 : i32
    return %arg0, %c0_i32 : i32, i32
  }
}

</mosaic_0001>

<llo_original>
// kernel: tpu_custom_call.1
$region0: #{tpu_custom_call.1}
  #allocation0 [shape = 'u32[]', space=smem, size = 0x4, offset = 0x4, fixed_abs, tag = 'smem constant byte address 0x4 - core index']
  #allocation1 [shape = 'u32[144,128]{1,0:T(1,128)}', space=vmem, size = 0x12000, scoped, tag = 'internal scratch']
  %s0 = inlined_call_operand.hbm [shape: f32[16,128], index: 0, kind: input, shape index: {}]
  %s1 = inlined_call_operand.hbm [shape: bf16[128,128], index: 1, kind: input, shape index: {}]
  %s2 = inlined_call_operand.vmem [shape: f32[1,128], index: 2, kind: input, shape index: {}]
  %s3 = inlined_call_operand.hbm [shape: bf16[2,128,128], index: 3, kind: input, shape index: {}]
  %s4 = inlined_call_operand.vmem [shape: f32[2,1,128], index: 4, kind: input, shape index: {}]
  %s5 = inlined_call_operand.hbm [shape: bf16[128,128], index: 5, kind: input, shape index: {}]
  %s6 = inlined_call_operand.vmem [shape: f32[1,128], index: 6, kind: input, shape index: {}]
  %s7 = inlined_call_operand.hbm [shape: f32[16,128], index: 7, kind: output, shape index: {}]
  %s8 = sld [smem:[#allocation0]]
  $region54: #{tpu_custom_call.1} parent=0
    _
  %s10 = ssub.s32 1, %s8
  %s11 = scalar_select 0, %s10, %s8
  $region1: #{tpu_custom_call.1} parent=0
    #allocation2 [shape = 'u8[8192]{0}', space=vmem, size = 0x2000, scoped, tag = 'input window, operand 0, single buffered']
    #allocation3 [shape = 's32[1]{0}', space=sflag, size = 0x4, scoped, tag = 'scoped memory for tpu_custom_call.1']
    #allocation4 [shape = 's32[1]{0}', space=sflag, size = 0x4, scoped, tag = 'scoped memory for tpu_custom_call.1']
    #allocation5 [shape = 'u8[32768]{0}', space=vmem, size = 0x8000, scoped, tag = 'input window, operand 1, single buffered']
    #allocation6 [shape = 's32[1]{0}', space=sflag, size = 0x4, scoped, tag = 'scoped memory for tpu_custom_call.1']
    #allocation7 [shape = 'u8[65536]{0}', space=vmem, size = 0x10000, scoped, tag = 'input window, operand 3, single buffered']
    #allocation8 [shape = 'u8[32768]{0}', space=vmem, size = 0x8000, scoped, tag = 'input window, operand 5, single buffered']
    #allocation9 [shape = 's32[1]{0}', space=sflag, size = 0x4, scoped, tag = 'scoped memory for tpu_custom_call.1']
    #allocation10 [shape = 'u8[8192]{0}', space=vmem, size = 0x2000, scoped, tag = 'output window, operand 0, single buffered']
    %12 = vsyncpa [#allocation3], 0
    %13 = vsyncpa [#allocation6], 0
    %14 = vsyncpa [#allocation9], 0
    %15 = vsyncpa [#allocation4], 0
    // Predicated region
    $region2: #{tpu_custom_call.1} parent=1 // pred_check
      _
    $region3: #{tpu_custom_call.1} parent=1 // pred_check_branch
      %17 = sbr.rel (0) target = $region5
    $region4: #{tpu_custom_call.1} parent=1 // pred_region
      %s19 = ssub.s32 256, 256
      %20 = vsyncadd [#allocation3], %s19
      %s21 = sshll.u32 [#allocation2], 4
      %s22 = int_to_ptr.vmem [resolvable:$true] %s21
      %27 = dma.hbm_to_vmem [thread:$0]  %s0, 256, %s22, [#allocation3], 128, 128, 8
    $region5: #{tpu_custom_call.1} parent=1 // pred_fallthru
      _
    // Predicated region
    $region6: #{tpu_custom_call.1} parent=1 // pred_check
      _
    $region7: #{tpu_custom_call.1} parent=1 // pred_check_branch
      %29 = sbr.rel (0) target = $region9
    $region8: #{tpu_custom_call.1} parent=1 // pred_region
      %s31 = ssub.s32 1024, 1024
      %32 = vsyncadd [#allocation6], %s31
      %s33 = sshll.u32 [#allocation5], 4
      %s34 = int_to_ptr.vmem [resolvable:$true] %s33
      %39 = dma.hbm_to_vmem [thread:$0]  %s1, 1024, %s34, [#allocation6], 64, 64, 4
    $region9: #{tpu_custom_call.1} parent=1 // pred_fallthru
      _
    // Predicated region
    $region10: #{tpu_custom_call.1} parent=1 // pred_check
      _
    $region11: #{tpu_custom_call.1} parent=1 // pred_check_branch
      %41 = sbr.rel (0) target = $region13
    $region12: #{tpu_custom_call.1} parent=1 // pred_region
      _
    $region13: #{tpu_custom_call.1} parent=1 // pred_fallthru
      _
    // Predicated region
    $region14: #{tpu_custom_call.1} parent=1 // pred_check
      _
    $region15: #{tpu_custom_call.1} parent=1 // pred_check_branch
      %43 = sbr.rel (0) target = $region17
    $region16: #{tpu_custom_call.1} parent=1 // pred_region
      %s45 = ssub.s32 2048, 2048
      %46 = vsyncadd [#allocation6], %s45
      %s47 = sshll.u32 [#allocation7], 4
      %s48 = int_to_ptr.vmem [resolvable:$true] %s47
      %53 = dma.hbm_to_vmem [thread:$0]  %s3, 2048, %s48, [#allocation6], 64, 64, 4
    $region17: #{tpu_custom_call.1} parent=1 // pred_fallthru
      _
    // Predicated region
    $region18: #{tpu_custom_call.1} parent=1 // pred_check
      _
    $region19: #{tpu_custom_call.1} parent=1 // pred_check_branch
      %55 = sbr.rel (0) target = $region21
    $region20: #{tpu_custom_call.1} parent=1 // pred_region
      _
    $region21: #{tpu_custom_call.1} parent=1 // pred_fallthru
      _
    // Predicated region
    $region22: #{tpu_custom_call.1} parent=1 // pred_check
      _
    $region23: #{tpu_custom_call.1} parent=1 // pred_check_branch
      %57 = sbr.rel (0) target = $region25
    $region24: #{tpu_custom_call.1} parent=1 // pred_region
      %s59 = ssub.s32 1024, 1024
      %60 = vsyncadd [#allocation9], %s59
      %s61 = sshll.u32 [#allocation8], 4
      %s62 = int_to_ptr.vmem [resolvable:$true] %s61
      %67 = dma.hbm_to_vmem [thread:$0]  %s5, 1024, %s62, [#allocation9], 64, 64, 4
    $region25: #{tpu_custom_call.1} parent=1 // pred_fallthru
      _
    // Predicated region
    $region26: #{tpu_custom_call.1} parent=1 // pred_check
      _
    $region27: #{tpu_custom_call.1} parent=1 // pred_check_branch
      %69 = sbr.rel (0) target = $region29
    $region28: #{tpu_custom_call.1} parent=1 // pred_region
      _
    $region29: #{tpu_custom_call.1} parent=1 // pred_fallthru
      _
    // Predicated region
    $region30: #{tpu_custom_call.1} parent=1 // pred_check
      _
    $region31: #{tpu_custom_call.1} parent=1 // pred_check_branch
      %71 = sbr.rel (0) target = $region33
    $region32: #{tpu_custom_call.1} parent=1 // pred_region
      %72 = dma.done [#allocation3], 256
    $region33: #{tpu_custom_call.1} parent=1 // pred_fallthru
      _
    // Predicated region
    $region34: #{tpu_custom_call.1} parent=1 // pred_check
      _
    $region35: #{tpu_custom_call.1} parent=1 // pred_check_branch
      %74 = sbr.rel (0) target = $region37
    $region36: #{tpu_custom_call.1} parent=1 // pred_region
      %75 = dma.done [#allocation6], 1024
    $region37: #{tpu_custom_call.1} parent=1 // pred_fallthru
      _
    // Predicated region
    $region38: #{tpu_custom_call.1} parent=1 // pred_check
      _
    $region39: #{tpu_custom_call.1} parent=1 // pred_check_branch
      %77 = sbr.rel (0) target = $region41
    $region40: #{tpu_custom_call.1} parent=1 // pred_region
      %78 = dma.done [#allocation6], 2048
    $region41: #{tpu_custom_call.1} parent=1 // pred_fallthru
      _
    // Predicated region
    $region42: #{tpu_custom_call.1} parent=1 // pred_check
      _
    $region43: #{tpu_custom_call.1} parent=1 // pred_check_branch
      %80 = sbr.rel (0) target = $region45
    $region44: #{tpu_custom_call.1} parent=1 // pred_region
      %81 = dma.done [#allocation9], 1024
    $region45: #{tpu_custom_call.1} parent=1 // pred_fallthru
      _
    %v83 = vld [vmem:[#allocation2] sm:$0xff]
    %v84 = vld [vmem:[#allocation2 + $0x8] sm:$0xff]
    %v85 = vpack.c.bf16 %v84, %v83
    %v86 = vld [vmem:[#allocation5] sm:$0xf]
    %v87 = vld [vmem:[#allocation5 + $0x4] sm:$0xf]
    %v88 = vld [vmem:[#allocation5 + $0x8] sm:$0xf]
    %v89 = vld [vmem:[#allocation5 + $0xc] sm:$0xf]
    %v90 = vld [vmem:[#allocation5 + $0x10] sm:$0xf]
    %v91 = vld [vmem:[#allocation5 + $0x14] sm:$0xf]
    %v92 = vld [vmem:[#allocation5 + $0x18] sm:$0xf]
    %v93 = vld [vmem:[#allocation5 + $0x1c] sm:$0xf]
    %v94 = vld [vmem:[#allocation5 + $0x20] sm:$0xf]
    %v95 = vld [vmem:[#allocation5 + $0x24] sm:$0xf]
    %v96 = vld [vmem:[#allocation5 + $0x28] sm:$0xf]
    %v97 = vld [vmem:[#allocation5 + $0x2c] sm:$0xf]
    %v98 = vld [vmem:[#allocation5 + $0x30] sm:$0xf]
    %v99 = vld [vmem:[#allocation5 + $0x34] sm:$0xf]
    %v100 = vld [vmem:[#allocation5 + $0x38] sm:$0xf]
    %v101 = vld [vmem:[#allocation5 + $0x3c] sm:$0xf]
    %v102 = vld [vmem:[%s2] sm:$0x1]
    %v104 = vlaneseq
    %v105 = vshrl.u32 %v104, 7
    %v106 = vsub.s32 0, %v105
    %v107 = vrot.slane %v102, %v106
    %v125 = vunpack.c.l.b16 %v86
    %v126 = vunpack.c.l.b16 %v87
    %v127 = vunpack.c.l.b16 %v88
    %v128 = vunpack.c.l.b16 %v89
    %v129 = vunpack.c.l.b16 %v90
    %v130 = vunpack.c.l.b16 %v91
    %v131 = vunpack.c.l.b16 %v92
    %v132 = vunpack.c.l.b16 %v93
    %v133 = vunpack.c.l.b16 %v94
    %v134 = vunpack.c.l.b16 %v95
    %v135 = vunpack.c.l.b16 %v96
    %v136 = vunpack.c.l.b16 %v97
    %v137 = vunpack.c.l.b16 %v98
    %v138 = vunpack.c.l.b16 %v99
    %v139 = vunpack.c.l.b16 %v100
    %v140 = vunpack.c.l.b16 %v101
    %v141 = vpack.c.b16 %v126, %v125
    %v142 = vpack.c.b16 %v128, %v127
    %v143 = vpack.c.b16 %v130, %v129
    %v144 = vpack.c.b16 %v132, %v131
    %v145 = vpack.c.b16 %v134, %v133
    %v146 = vpack.c.b16 %v136, %v135
    %v147 = vpack.c.b16 %v138, %v137
    %v148 = vpack.c.b16 %v140, %v139
    %157 = vmatprep.subr.bf16.mxu0 0
    %158 = vmatpush1.bf16.msra.mxu0 %v148
    %159 = vmatprep.subr.bf16.mxu0 0
    %160 = vmatpush1.bf16.msra.mxu0 %v147
    %161 = vmatprep.subr.bf16.mxu0 0
    %162 = vmatpush1.bf16.msra.mxu0 %v146
    %163 = vmatprep.subr.bf16.mxu0 0
    %164 = vmatpush1.bf16.msra.mxu0 %v145
    %165 = vmatprep.subr.bf16.mxu0 0
    %166 = vmatpush1.bf16.msra.mxu0 %v144
    %167 = vmatprep.subr.bf16.mxu0 0
    %168 = vmatpush1.bf16.msra.mxu0 %v143
    %169 = vmatprep.subr.bf16.mxu0 0
    %170 = vmatpush1.bf16.msra.mxu0 %v142
    %171 = vmatprep.subr.bf16.mxu0 0
    %172 = vmatpush1.bf16.msra.mxu0 %v141
    %173 = vmatprep.subr.bf16.mxu0 0
    %174 = vmatpush2.bf16.msra.mxu0 0
    %175 = vmatprep.subr.bf16.mxu0 0
    %176 = vmatpush2.bf16.msra.mxu0 0
    %177 = vmatprep.subr.bf16.mxu0 0
    %178 = vmatpush2.bf16.msra.mxu0 0
    %179 = vmatprep.subr.bf16.mxu0 0
    %180 = vmatpush2.bf16.msra.mxu0 0
    %181 = vmatprep.subr.bf16.mxu0 0
    %182 = vmatpush2.bf16.msra.mxu0 0
    %183 = vmatprep.subr.bf16.mxu0 0
    %184 = vmatpush2.bf16.msra.mxu0 0
    %185 = vmatprep.subr.bf16.mxu0 0
    %186 = vmatpush2.bf16.msra.mxu0 0
    %187 = vmatprep.subr.bf16.mxu0 0
    %188 = vmatpush2.bf16.msra.mxu0 0
    %189 = vmatprep.mubr.bf16.mxu0 0
    %190 = vmatmul.mubr.bf16.gmra.mxu0 %v85
    %v191 = vpop.f32.mrf.mxu0
    %v192 = vadd.f32 %v107, %v191
    %v193 = vpop.f32.mrf.mxu0
    %v194 = vpop.f32.mrf.mxu0
    %v195 = vadd.f32 %v107, %v194
    %v196 = vpop.f32.mrf.mxu0
    %197 = vdwg.mxu0
    %v198 = vmax.f32 %v192, 0.0
    %v199 = vmax.f32 %v195, 0.0
    %v200 = vpack.c.bf16 %v199, %v198
    %v201 = vld [vmem:[#allocation7] sm:$0xf]
    %v202 = vld [vmem:[#allocation7 + $0x4] sm:$0xf]
    %v203 = vld [vmem:[#allocation7 + $0x8] sm:$0xf]
    %v204 = vld [vmem:[#allocation7 + $0xc] sm:$0xf]
    %v205 = vld [vmem:[#allocation7 + $0x10] sm:$0xf]
    %v206 = vld [vmem:[#allocation7 + $0x14] sm:$0xf]
    %v207 = vld [vmem:[#allocation7 + $0x18] sm:$0xf]
    %v208 = vld [vmem:[#allocation7 + $0x1c] sm:$0xf]
    %v209 = vld [vmem:[#allocation7 + $0x20] sm:$0xf]
    %v210 = vld [vmem:[#allocation7 + $0x24] sm:$0xf]
    %v211 = vld [vmem:[#allocation7 + $0x28] sm:$0xf]
    %v212 = vld [vmem:[#allocation7 + $0x2c] sm:$0xf]
    %v213 = vld [vmem:[#allocation7 + $0x30] sm:$0xf]
    %v214 = vld [vmem:[#allocation7 + $0x34] sm:$0xf]
    %v215 = vld [vmem:[#allocation7 + $0x38] sm:$0xf]
    %v216 = vld [vmem:[#allocation7 + $0x3c] sm:$0xf]
    %v217 = vld [vmem:[%s4] sm:$0x1]
    %v219 = vlaneseq
    %v220 = vshrl.u32 %v219, 7
    %v221 = vsub.s32 0, %v220
    %v222 = vrot.slane %v217, %v221
    %v240 = vunpack.c.l.b16 %v201
    %v241 = vunpack.c.l.b16 %v202
    %v242 = vunpack.c.l.b16 %v203
    %v243 = vunpack.c.l.b16 %v204
    %v244 = vunpack.c.l.b16 %v205
    %v245 = vunpack.c.l.b16 %v206
    %v246 = vunpack.c.l.b16 %v207
    %v247 = vunpack.c.l.b16 %v208
    %v248 = vunpack.c.l.b16 %v209
    %v249 = vunpack.c.l.b16 %v210
    %v250 = vunpack.c.l.b16 %v211
    %v251 = vunpack.c.l.b16 %v212
    %v252 = vunpack.c.l.b16 %v213
    %v253 = vunpack.c.l.b16 %v214
    %v254 = vunpack.c.l.b16 %v215
    %v255 = vunpack.c.l.b16 %v216
    %v256 = vpack.c.b16 %v241, %v240
    %v257 = vpack.c.b16 %v243, %v242
    %v258 = vpack.c.b16 %v245, %v244
    %v259 = vpack.c.b16 %v247, %v246
    %v260 = vpack.c.b16 %v249, %v248
    %v261 = vpack.c.b16 %v251, %v250
    %v262 = vpack.c.b16 %v253, %v252
    %v263 = vpack.c.b16 %v255, %v254
    %272 = vmatprep.subr.bf16.mxu0 0
    %273 = vmatpush1.bf16.msra.mxu0 %v263
    %274 = vmatprep.subr.bf16.mxu0 0
    %275 = vmatpush1.bf16.msra.mxu0 %v262
    %276 = vmatprep.subr.bf16.mxu0 0
    %277 = vmatpush1.bf16.msra.mxu0 %v261
    %278 = vmatprep.subr.bf16.mxu0 0
    %279 = vmatpush1.bf16.msra.mxu0 %v260
    %280 = vmatprep.subr.bf16.mxu0 0
    %281 = vmatpush1.bf16.msra.mxu0 %v259
    %282 = vmatprep.subr.bf16.mxu0 0
    %283 = vmatpush1.bf16.msra.mxu0 %v258
    %284 = vmatprep.subr.bf16.mxu0 0
    %285 = vmatpush1.bf16.msra.mxu0 %v257
    %286 = vmatprep.subr.bf16.mxu0 0
    %287 = vmatpush1.bf16.msra.mxu0 %v256
    %288 = vmatprep.subr.bf16.mxu0 0
    %289 = vmatpush2.bf16.msra.mxu0 0
    %290 = vmatprep.subr.bf16.mxu0 0
    %291 = vmatpush2.bf16.msra.mxu0 0
    %292 = vmatprep.subr.bf16.mxu0 0
    %293 = vmatpush2.bf16.msra.mxu0 0
    %294 = vmatprep.subr.bf16.mxu0 0
    %295 = vmatpush2.bf16.msra.mxu0 0
    %296 = vmatprep.subr.bf16.mxu0 0
    %297 = vmatpush2.bf16.msra.mxu0 0
    %298 = vmatprep.subr.bf16.mxu0 0
    %299 = vmatpush2.bf16.msra.mxu0 0
    %300 = vmatprep.subr.bf16.mxu0 0
    %301 = vmatpush2.bf16.msra.mxu0 0
    %302 = vmatprep.subr.bf16.mxu0 0
    %303 = vmatpush2.bf16.msra.mxu0 0
    %304 = vmatprep.mubr.bf16.mxu0 0
    %305 = vmatmul.mubr.bf16.gmra.mxu0 %v200
    %v306 = vpop.f32.mrf.mxu0
    %v307 = vadd.f32 %v222, %v306
    %v308 = vpop.f32.mrf.mxu0
    %v309 = vpop.f32.mrf.mxu0
    %v310 = vadd.f32 %v222, %v309
    %v311 = vpop.f32.mrf.mxu0
    %312 = vdwg.mxu0
    %v313 = vmax.f32 %v307, 0.0
    %v314 = vmax.f32 %v310, 0.0
    %v315 = vpack.c.bf16 %v314, %v313
    %s316 = scalar_lea.vmem [#allocation7], 64
    %v317 = vld [vmem:[%s316] sm:$0xf]
    %v318 = vld [vmem:[%s316 + $0x4] sm:$0xf]
    %v319 = vld [vmem:[%s316 + $0x8] sm:$0xf]
    %v320 = vld [vmem:[%s316 + $0xc] sm:$0xf]
    %v321 = vld [vmem:[%s316 + $0x10] sm:$0xf]
    %v322 = vld [vmem:[%s316 + $0x14] sm:$0xf]
    %v323 = vld [vmem:[%s316 + $0x18] sm:$0xf]
    %v324 = vld [vmem:[%s316 + $0x1c] sm:$0xf]
    %v325 = vld [vmem:[%s316 + $0x20] sm:$0xf]
    %v326 = vld [vmem:[%s316 + $0x24] sm:$0xf]
    %v327 = vld [vmem:[%s316 + $0x28] sm:$0xf]
    %v328 = vld [vmem:[%s316 + $0x2c] sm:$0xf]
    %v329 = vld [vmem:[%s316 + $0x30] sm:$0xf]
    %v330 = vld [vmem:[%s316 + $0x34] sm:$0xf]
    %v331 = vld [vmem:[%s316 + $0x38] sm:$0xf]
    %v332 = vld [vmem:[%s316 + $0x3c] sm:$0xf]
    %s333 = scalar_lea.vmem %s4, 1
    %v334 = vld [vmem:[%s333] sm:$0x1]
    %v336 = vlaneseq
    %v337 = vshrl.u32 %v336, 7
    %v338 = vsub.s32 0, %v337
    %v339 = vrot.slane %v334, %v338
    %v357 = vunpack.c.l.b16 %v317
    %v358 = vunpack.c.l.b16 %v318
    %v359 = vunpack.c.l.b16 %v319
    %v360 = vunpack.c.l.b16 %v320
    %v361 = vunpack.c.l.b16 %v321
    %v362 = vunpack.c.l.b16 %v322
    %v363 = vunpack.c.l.b16 %v323
    %v364 = vunpack.c.l.b16 %v324
    %v365 = vunpack.c.l.b16 %v325
    %v366 = vunpack.c.l.b16 %v326
    %v367 = vunpack.c.l.b16 %v327
    %v368 = vunpack.c.l.b16 %v328
    %v369 = vunpack.c.l.b16 %v329
    %v370 = vunpack.c.l.b16 %v330
    %v371 = vunpack.c.l.b16 %v331
    %v372 = vunpack.c.l.b16 %v332
    %v373 = vpack.c.b16 %v358, %v357
    %v374 = vpack.c.b16 %v360, %v359
    %v375 = vpack.c.b16 %v362, %v361
    %v376 = vpack.c.b16 %v364, %v363
    %v377 = vpack.c.b16 %v366, %v365
    %v378 = vpack.c.b16 %v368, %v367
    %v379 = vpack.c.b16 %v370, %v369
    %v380 = vpack.c.b16 %v372, %v371
    %389 = vmatprep.subr.bf16.mxu0 0
    %390 = vmatpush1.bf16.msra.mxu0 %v380
    %391 = vmatprep.subr.bf16.mxu0 0
    %392 = vmatpush1.bf16.msra.mxu0 %v379
    %393 = vmatprep.subr.bf16.mxu0 0
    %394 = vmatpush1.bf16.msra.mxu0 %v378
    %395 = vmatprep.subr.bf16.mxu0 0
    %396 = vmatpush1.bf16.msra.mxu0 %v377
    %397 = vmatprep.subr.bf16.mxu0 0
    %398 = vmatpush1.bf16.msra.mxu0 %v376
    %399 = vmatprep.subr.bf16.mxu0 0
    %400 = vmatpush1.bf16.msra.mxu0 %v375
    %401 = vmatprep.subr.bf16.mxu0 0
    %402 = vmatpush1.bf16.msra.mxu0 %v374
    %403 = vmatprep.subr.bf16.mxu0 0
    %404 = vmatpush1.bf16.msra.mxu0 %v373
    %405 = vmatprep.subr.bf16.mxu0 0
    %406 = vmatpush2.bf16.msra.mxu0 0
    %407 = vmatprep.subr.bf16.mxu0 0
    %408 = vmatpush2.bf16.msra.mxu0 0
    %409 = vmatprep.subr.bf16.mxu0 0
    %410 = vmatpush2.bf16.msra.mxu0 0
    %411 = vmatprep.subr.bf16.mxu0 0
    %412 = vmatpush2.bf16.msra.mxu0 0
    %413 = vmatprep.subr.bf16.mxu0 0
    %414 = vmatpush2.bf16.msra.mxu0 0
    %415 = vmatprep.subr.bf16.mxu0 0
    %416 = vmatpush2.bf16.msra.mxu0 0
    %417 = vmatprep.subr.bf16.mxu0 0
    %418 = vmatpush2.bf16.msra.mxu0 0
    %419 = vmatprep.subr.bf16.mxu0 0
    %420 = vmatpush2.bf16.msra.mxu0 0
    %421 = vmatprep.mubr.bf16.mxu0 0
    %422 = vmatmul.mubr.bf16.gmra.mxu0 %v315
    %v423 = vpop.f32.mrf.mxu0
    %v424 = vadd.f32 %v339, %v423
    %v425 = vpop.f32.mrf.mxu0
    %v426 = vpop.f32.mrf.mxu0
    %v427 = vadd.f32 %v339, %v426
    %v428 = vpop.f32.mrf.mxu0
    %429 = vdwg.mxu0
    %v430 = vmax.f32 %v424, 0.0
    %v431 = vmax.f32 %v427, 0.0
    %v432 = vpack.c.bf16 %v431, %v430
    %v433 = vld [vmem:[#allocation8] sm:$0xf]
    %v434 = vld [vmem:[#allocation8 + $0x4] sm:$0xf]
    %v435 = vld [vmem:[#allocation8 + $0x8] sm:$0xf]
    %v436 = vld [vmem:[#allocation8 + $0xc] sm:$0xf]
    %v437 = vld [vmem:[#allocation8 + $0x10] sm:$0xf]
    %v438 = vld [vmem:[#allocation8 + $0x14] sm:$0xf]
    %v439 = vld [vmem:[#allocation8 + $0x18] sm:$0xf]
    %v440 = vld [vmem:[#allocation8 + $0x1c] sm:$0xf]
    %v441 = vld [vmem:[#allocation8 + $0x20] sm:$0xf]
    %v442 = vld [vmem:[#allocation8 + $0x24] sm:$0xf]
    %v443 = vld [vmem:[#allocation8 + $0x28] sm:$0xf]
    %v444 = vld [vmem:[#allocation8 + $0x2c] sm:$0xf]
    %v445 = vld [vmem:[#allocation8 + $0x30] sm:$0xf]
    %v446 = vld [vmem:[#allocation8 + $0x34] sm:$0xf]
    %v447 = vld [vmem:[#allocation8 + $0x38] sm:$0xf]
    %v448 = vld [vmem:[#allocation8 + $0x3c] sm:$0xf]
    %v449 = vld [vmem:[%s6] sm:$0x1]
    %v451 = vlaneseq
    %v452 = vshrl.u32 %v451, 7
    %v453 = vsub.s32 0, %v452
    %v454 = vrot.slane %v449, %v453
    %v472 = vunpack.c.l.b16 %v433
    %v473 = vunpack.c.l.b16 %v434
    %v474 = vunpack.c.l.b16 %v435
    %v475 = vunpack.c.l.b16 %v436
    %v476 = vunpack.c.l.b16 %v437
    %v477 = vunpack.c.l.b16 %v438
    %v478 = vunpack.c.l.b16 %v439
    %v479 = vunpack.c.l.b16 %v440
    %v480 = vunpack.c.l.b16 %v441
    %v481 = vunpack.c.l.b16 %v442
    %v482 = vunpack.c.l.b16 %v443
    %v483 = vunpack.c.l.b16 %v444
    %v484 = vunpack.c.l.b16 %v445
    %v485 = vunpack.c.l.b16 %v446
    %v486 = vunpack.c.l.b16 %v447
    %v487 = vunpack.c.l.b16 %v448
    %v488 = vpack.c.b16 %v473, %v472
    %v489 = vpack.c.b16 %v475, %v474
    %v490 = vpack.c.b16 %v477, %v476
    %v491 = vpack.c.b16 %v479, %v478
    %v492 = vpack.c.b16 %v481, %v480
    %v493 = vpack.c.b16 %v483, %v482
    %v494 = vpack.c.b16 %v485, %v484
    %v495 = vpack.c.b16 %v487, %v486
    %504 = vmatprep.subr.bf16.mxu0 0
    %505 = vmatpush1.bf16.msra.mxu0 %v495
    %506 = vmatprep.subr.bf16.mxu0 0
    %507 = vmatpush1.bf16.msra.mxu0 %v494
    %508 = vmatprep.subr.bf16.mxu0 0
    %509 = vmatpush1.bf16.msra.mxu0 %v493
    %510 = vmatprep.subr.bf16.mxu0 0
    %511 = vmatpush1.bf16.msra.mxu0 %v492
    %512 = vmatprep.subr.bf16.mxu0 0
    %513 = vmatpush1.bf16.msra.mxu0 %v491
    %514 = vmatprep.subr.bf16.mxu0 0
    %515 = vmatpush1.bf16.msra.mxu0 %v490
    %516 = vmatprep.subr.bf16.mxu0 0
    %517 = vmatpush1.bf16.msra.mxu0 %v489
    %518 = vmatprep.subr.bf16.mxu0 0
    %519 = vmatpush1.bf16.msra.mxu0 %v488
    %520 = vmatprep.subr.bf16.mxu0 0
    %521 = vmatpush2.bf16.msra.mxu0 0
    %522 = vmatprep.subr.bf16.mxu0 0
    %523 = vmatpush2.bf16.msra.mxu0 0
    %524 = vmatprep.subr.bf16.mxu0 0
    %525 = vmatpush2.bf16.msra.mxu0 0
    %526 = vmatprep.subr.bf16.mxu0 0
    %527 = vmatpush2.bf16.msra.mxu0 0
    %528 = vmatprep.subr.bf16.mxu0 0
    %529 = vmatpush2.bf16.msra.mxu0 0
    %530 = vmatprep.subr.bf16.mxu0 0
    %531 = vmatpush2.bf16.msra.mxu0 0
    %532 = vmatprep.subr.bf16.mxu0 0
    %533 = vmatpush2.bf16.msra.mxu0 0
    %534 = vmatprep.subr.bf16.mxu0 0
    %535 = vmatpush2.bf16.msra.mxu0 0
    %536 = vmatprep.mubr.bf16.mxu0 0
    %537 = vmatmul.mubr.bf16.gmra.mxu0 %v432
    %v538 = vpop.f32.mrf.mxu0
    %v539 = vadd.f32 %v454, %v538
    %v540 = vpop.f32.mrf.mxu0
    %v541 = vpop.f32.mrf.mxu0
    %v542 = vadd.f32 %v454, %v541
    %v543 = vpop.f32.mrf.mxu0
    %544 = vdwg.mxu0
    %545 = vst [vmem:[#allocation10] sm:$0xff] %v539
    %546 = vst [vmem:[#allocation10 + $0x8] sm:$0xff] %v542
    // Predicated region
    $region46: #{tpu_custom_call.1} parent=1 // pred_check
      _
    $region47: #{tpu_custom_call.1} parent=1 // pred_check_branch
      %548 = sbr.rel (0) target = $region49
    $region48: #{tpu_custom_call.1} parent=1 // pred_region
      %s550 = ssub.s32 256, 256
      %551 = vsyncadd [#allocation4], %s550
      %s552 = sshll.u32 [#allocation10], 4
      %s553 = int_to_ptr.vmem [resolvable:$true] %s552
      %558 = dma.vmem_to_hbm [thread:$0]  %s553, 256, %s7, [#allocation4], 128, 128, 8
    $region49: #{tpu_custom_call.1} parent=1 // pred_fallthru
      _
    // Predicated region
    $region50: #{tpu_custom_call.1} parent=1 // pred_check
      _
    $region51: #{tpu_custom_call.1} parent=1 // pred_check_branch
      %560 = sbr.rel (0) target = $region53
    $region52: #{tpu_custom_call.1} parent=1 // pred_region
      %561 = dma.done [#allocation4], 256
    $region53: #{tpu_custom_call.1} parent=1 // pred_fallthru
      _
    %562 = vsyncpa [#allocation3], 1
    %563 = vsyncpa [#allocation6], 1
    %564 = vsyncpa [#allocation9], 1
    %565 = vsyncpa [#allocation4], 1

</llo_original>
